<compile_context>
chip_gen: v6e
topology: v6e:2x2x1
jax: 0.10.0
libtpu: 0.0.40
codegen_flags: <defaults>
</compile_context>

<pallas_src>
import functools

import jax
import jax.numpy as jnp
import numpy as np
from jax.experimental import pallas as pl
from jax.experimental.pallas import tpu as pltpu


def _round_up(x: int, m: int) -> int:
    return ((x + m - 1) // m) * m


def _tpu_vmem_bytes() -> int:
    """Physical VMEM per TensorCore (v5e/v6e: 128 MiB, v7x: 64 MiB)."""
    try:
        return int(pltpu.get_tpu_info().vmem_capacity_bytes)
    except Exception:
        pass
    try:
        kind = jax.devices()[0].device_kind.lower()
    except Exception:
        kind = ""
    return 64 * 2**20 if "7" in kind else 128 * 2**20


def _row_tiles(M: int, block_m: int):
    """Row tiling that minimizes padded writeback and balances 2 TensorCores."""
    n_rt = -(-M // block_m)
    if n_rt == 1 and M >= 256:
        n_rt = 2                      # give both v7x TensorCores a row tile
    if n_rt > 1 and n_rt % 2 == 1:
        n_rt += 1                     # even #tiles -> balanced across 2 TCs
    bm = _round_up(-(-M // n_rt), 8)
    grid_m = -(-M // bm)
    m_pad = grid_m * bm
    return bm, grid_m, m_pad


def _est_vmem(bm, bn, d_in, h1, h2, csz, osz):
    """Rough double-buffered VMEM footprint for the chosen tiles."""
    return (2 * bm * d_in * csz                    # z tile
            + 2 * (d_in * h1 + h1 * h2) * csz      # hidden weights (resident)
            + 2 * (h1 + h2) * 4                    # hidden biases (f32)
            + 2 * 2 * h2 * bn * csz                # two head-weight tiles
            + 2 * 2 * bn * 4                       # two head-bias tiles
            + 2 * 2 * bm * bn * osz                # pi + log_mu output tiles
            + 2 * bm * max(h1, h2) * 4)            # in-kernel hidden activations


def _zinb_decoder_kernel(z_ref, w1_ref, b1_ref, w2_ref, b2_ref,
                         wmu_ref, bmu_ref, wpi_ref, bpi_ref,
                         pi_ref, logmu_ref, *, compute_dtype):
    # Hidden MLP (tiny: d_in/h1/h2 are small).  Recomputed per grid step so the
    # head weights (n-axis is the OUTER grid dim) stream from HBM exactly once.
    h = jnp.dot(z_ref[...], w1_ref[...], preferred_element_type=jnp.float32)
    h = jnp.maximum(h + b1_ref[...], 0.0)
    h = jnp.dot(h.astype(compute_dtype), w2_ref[...],
                preferred_element_type=jnp.float32)
    h = jnp.maximum(h + b2_ref[...], 0.0).astype(compute_dtype)

    # Two heads, two separate MXU passes, written directly to their output
    # tiles (no fused (bm, 2*bn) intermediate, no slice-stores).
    logmu_ref[...] = (jnp.dot(h, wmu_ref[...], preferred_element_type=jnp.float32)
                      + bmu_ref[...]).astype(logmu_ref.dtype)
    pi_ref[...] = (jnp.dot(h, wpi_ref[...], preferred_element_type=jnp.float32)
                   + bpi_ref[...]).astype(pi_ref.dtype)


@functools.partial(
    jax.jit,
    static_argnames=("sampling", "bm", "bn", "grid_m", "grid_n", "m_pad",
                     "n_pad", "d_out", "compute_dtype", "out_dtype",
                     "vmem_limit"))
def _zinb_decoder_pallas(z, w1, b1, w2, b2, wmu, bmu, wpi, bpi, *,
                         sampling, bm, bn, grid_m, grid_n, m_pad, n_pad,
                         d_out, compute_dtype, out_dtype, vmem_limit):
    M, d_in = z.shape
    h1 = w1.shape[1]
    h2 = w2.shape[1]

    z_c = z.astype(compute_dtype)
    if m_pad != M:
        z_c = jnp.pad(z_c, ((0, m_pad - M), (0, 0)))

    kernel = functools.partial(_zinb_decoder_kernel, compute_dtype=compute_dtype)

    pi_p, logmu_p = pl.pallas_call(
        kernel,
        out_shape=(
            jax.ShapeDtypeStruct((m_pad, n_pad), out_dtype),   # pi
            jax.ShapeDtypeStruct((m_pad, n_pad), out_dtype),   # log_mu
        ),
        grid_spec=pltpu.PrefetchScalarGridSpec(
            num_scalar_prefetch=0,
            # n (gene tiles) OUTER, m (row tiles) INNER: head-weight blocks are
            # DMA'd once; only the tiny z tile is re-fetched per n tile.
            grid=(grid_n, grid_m),
            in_specs=[
                pl.BlockSpec((bm, d_in), lambda j, i: (i, 0)),   # z tile
                pl.BlockSpec((d_in, h1), lambda j, i: (0, 0)),   # w1 (resident)
                pl.BlockSpec((1, h1),    lambda j, i: (0, 0)),   # b1
                pl.BlockSpec((h1, h2),   lambda j, i: (0, 0)),   # w2 (resident)
                pl.BlockSpec((1, h2),    lambda j, i: (0, 0)),   # b2
                pl.BlockSpec((h2, bn),   lambda j, i: (0, j)),   # w_mu tile
                pl.BlockSpec((1, bn),    lambda j, i: (0, j)),   # b_mu tile
                pl.BlockSpec((h2, bn),   lambda j, i: (0, j)),   # w_pi tile
                pl.BlockSpec((1, bn),    lambda j, i: (0, j)),   # b_pi tile
            ],
            out_specs=[
                pl.BlockSpec((bm, bn), lambda j, i: (i, j)),     # pi
                pl.BlockSpec((bm, bn), lambda j, i: (i, j)),     # log_mu
            ],
        ),
        compiler_params=pltpu.CompilerParams(
            dimension_semantics=("parallel", "parallel"),
            vmem_limit_bytes=vmem_limit,
        ),
    )(z_c, w1, b1, w2, b2, wmu, bmu, wpi, bpi)

    pi_flat = pi_p[:M, :d_out]
    logmu_flat = logmu_p[:M, :d_out]

    # .view(sampling, -1, dim_out).squeeze(0)  (squeeze removes dim only if 1)
    log_mu = logmu_flat.reshape(sampling, -1, d_out)
    pi = pi_flat.reshape(sampling, -1, d_out)
    if sampling == 1:
        log_mu = log_mu[0]
        pi = pi[0]
    return pi, log_mu


class ZINBDecoderTPU:
    """ZINBDecoder forward on TPU.  Weight cast/pad is hoisted to __init__."""

    def __init__(self, params, *, compute_dtype=jnp.bfloat16, out_dtype=None,
                 block_m=None, block_n=None):
        (w1, b1, w2, b2, wmu, bmu, wpi, bpi, log_theta) = params
        self.d_in = w1.shape[0]
        self.h1 = w1.shape[1]
        self.h2 = w2.shape[1]
        self.d_out = wmu.shape[1]
        self.compute_dtype = compute_dtype
        self.out_dtype = out_dtype
        self.log_theta = log_theta     # unused in forward(); kept for fidelity

        vmem_phys = _tpu_vmem_bytes()
        # Never request more than 75% of physical VMEM (leave compiler headroom;
        # especially important on v7x where 64 MiB is the whole budget).
        self._vmem_budget = min(96 * 2**20, int(0.75 * vmem_phys))
        dflt_bm, dflt_bn = (256, 1024) if vmem_phys <= 64 * 2**20 else (512, 2048)
        self.block_m = block_m if block_m is not None else dflt_bm
        block_n = block_n if block_n is not None else dflt_bn

        # Column tiling: minimize n_pad - d_out while staying lane-dense (x128).
        n_ct = max(1, -(-self.d_out // block_n))
        self.bn = _round_up(-(-self.d_out // n_ct), 128)
        self.grid_n = -(-self.d_out // self.bn)
        self.n_pad = self.grid_n * self.bn

        def pad_cols(a):
            if self.n_pad == self.d_out:
                return a
            return jnp.pad(a, ((0, 0), (0, self.n_pad - self.d_out)))

        # One-time casts / padding (NOT in the per-call hot path).
        self.w1 = jnp.asarray(w1, compute_dtype)
        self.w2 = jnp.asarray(w2, compute_dtype)
        self.b1 = jnp.asarray(b1, jnp.float32)      # f32 bias/ReLU epilogue
        self.b2 = jnp.asarray(b2, jnp.float32)
        self.wmu = pad_cols(jnp.asarray(wmu, compute_dtype))
        self.wpi = pad_cols(jnp.asarray(wpi, compute_dtype))
        self.bmu = pad_cols(jnp.asarray(bmu, jnp.float32))
        self.bpi = pad_cols(jnp.asarray(bpi, jnp.float32))

    def __call__(self, z, sampling: int = 1):
        M = z.shape[0]
        out_dtype = self.out_dtype if self.out_dtype is not None else z.dtype
        out_dtype = jnp.dtype(out_dtype)
        csz = jnp.dtype(self.compute_dtype).itemsize
        osz = out_dtype.itemsize

        bm, grid_m, m_pad = _row_tiles(M, self.block_m)
        # Shrink the row tile if the estimate would blow the VMEM budget
        # (keeps double-buffering alive; v7x has only 64 MiB).
        while (_est_vmem(bm, self.bn, self.d_in, self.h1, self.h2, csz, osz)
               > self._vmem_budget and bm > 8):
            bm = max(8, _round_up(bm // 2, 8))
            grid_m = -(-M // bm)
            m_pad = grid_m * bm
        est = _est_vmem(bm, self.bn, self.d_in, self.h1, self.h2, csz, osz)
        vmem_limit = int(min(self._vmem_budget,
                             max(32 * 2**20, int(1.25 * est))))

        return _zinb_decoder_pallas(
            z, self.w1, self.b1, self.w2, self.b2,
            self.wmu, self.bmu, self.wpi, self.bpi,
            sampling=sampling, bm=bm, bn=self.bn, grid_m=grid_m,
            grid_n=self.grid_n, m_pad=m_pad, n_pad=self.n_pad,
            d_out=self.d_out, compute_dtype=self.compute_dtype,
            out_dtype=out_dtype, vmem_limit=vmem_limit)


def init_params(key, d_latent, hidden_dims, d_out, dtype=jnp.float32):
    """Deterministic synthetic parameter init (matches module __init__ shapes)."""
    dims = [d_latent, *hidden_dims]
    ks = jax.random.split(key, 2 * (len(dims) - 1) + 5)
    params = []
    ki = 0
    for i in range(len(dims) - 1):
        fan_in = dims[i]
        w = jax.random.normal(ks[ki], (dims[i], dims[i + 1]), dtype) / jnp.sqrt(fan_in)
        b = jax.random.normal(ks[ki + 1], (1, dims[i + 1]), dtype) * 0.01
        params += [w, b]
        ki += 2
    w_mu = jax.random.normal(ks[ki], (dims[-1], d_out), dtype) / jnp.sqrt(dims[-1])
    b_mu = jax.random.normal(ks[ki + 1], (1, d_out), dtype) * 0.01
    w_pi = jax.random.normal(ks[ki + 2], (dims[-1], d_out), dtype) / jnp.sqrt(dims[-1])
    b_pi = jax.random.normal(ks[ki + 3], (1, d_out), dtype) * 0.01
    # log_theta = rand(dim_output) - 0.5  (unused in forward, kept for fidelity)
    log_theta = jax.random.uniform(ks[ki + 4], (d_out,), dtype) - 0.5
    return (*params, w_mu, b_mu, w_pi, b_pi, log_theta)


def reference_forward(z, params, sampling):
    w1, b1, w2, b2, wmu, bmu, wpi, bpi, _ = params
    h = jnp.maximum(z @ w1 + b1, 0.0)
    h = jnp.maximum(h @ w2 + b2, 0.0)
    log_mu = (h @ wmu + bmu).reshape(sampling, -1, wmu.shape[1])
    pi = (h @ wpi + bpi).reshape(sampling, -1, wpi.shape[1])
    if sampling == 1:
        log_mu, pi = log_mu[0], pi[0]
    return pi, log_mu


if __name__ == "__main__":
    key = jax.random.PRNGKey(0)
    k_z, k_p = jax.random.split(key)

    # Small shapes consistent with the module: z is (S * B, D_latent).
    sampling = 2
    batch = 9                    # not a multiple of 8: exercises row padding
    d_latent = 32
    hidden_dims = [32, 64]       # self._cfg_hidden.dims = [d_latent, 32, 64]
    d_out = 128                  # dim_output

    z = jax.random.normal(k_z, (sampling * batch, d_latent), jnp.float32)
    params = init_params(k_p, d_latent, hidden_dims, d_out)
    pi_ref, log_mu_ref = reference_forward(z, params, sampling)

    # f32 compute path: tight numerical check against the pure-JAX reference.
    dec_f32 = ZINBDecoderTPU(params, compute_dtype=jnp.float32)
    pi, log_mu = dec_f32(z, sampling=sampling)
    jax.block_until_ready((pi, log_mu))
    np.testing.assert_allclose(np.asarray(pi), np.asarray(pi_ref),
                               rtol=1e-5, atol=1e-5)
    np.testing.assert_allclose(np.asarray(log_mu), np.asarray(log_mu_ref),
                               rtol=1e-5, atol=1e-5)

    # sampling=1 branch (squeeze(0) semantics).
    pi1, log_mu1 = dec_f32(z[:batch], sampling=1)
    jax.block_until_ready((pi1, log_mu1))
    pi1_ref, log_mu1_ref = reference_forward(z[:batch], params, 1)
    np.testing.assert_allclose(np.asarray(pi1), np.asarray(pi1_ref),
                               rtol=1e-5, atol=1e-5)
    np.testing.assert_allclose(np.asarray(log_mu1), np.asarray(log_mu1_ref),
                               rtol=1e-5, atol=1e-5)

    # Default (bf16 MXU operands, f32 accumulation) path: looser check.
    dec_bf16 = ZINBDecoderTPU(params)
    pi_bf, log_mu_bf = dec_bf16(z, sampling=sampling)
    jax.block_until_ready((pi_bf, log_mu_bf))
    np.testing.assert_allclose(np.asarray(pi_bf), np.asarray(pi_ref),
                               rtol=1e-1, atol=1e-1)
    np.testing.assert_allclose(np.asarray(log_mu_bf), np.asarray(log_mu_ref),
                               rtol=1e-1, atol=1e-1)

    # bf16 outputs (halves output writeback on a writeback-bound kernel).
    dec_bf16_out = ZINBDecoderTPU(params, out_dtype=jnp.bfloat16)
    pi_o, log_mu_o = dec_bf16_out(z, sampling=sampling)
    jax.block_until_ready((pi_o, log_mu_o))
    assert pi_o.shape == pi_ref.shape and log_mu_o.shape == log_mu_ref.shape
    assert pi_o.dtype == jnp.bfloat16 and log_mu_o.dtype == jnp.bfloat16
    assert np.all(np.isfinite(np.asarray(pi_o.astype(jnp.float32))))
    assert np.all(np.isfinite(np.asarray(log_mu_o.astype(jnp.float32))))

    print("KERNEL_OK")
</pallas_src>

<mosaic_0001>
module attributes {stable_mosaic.version = 11 : i64} {
  func.func @_zinb_decoder_kernel(%arg0: i32, %arg1: i32, %arg2: memref<24x32xf32, #tpu.memory_space<vmem>>, %arg3: memref<32x32xf32, #tpu.memory_space<vmem>>, %arg4: memref<1x32xf32, #tpu.memory_space<vmem>>, %arg5: memref<32x64xf32, #tpu.memory_space<vmem>>, %arg6: memref<1x64xf32, #tpu.memory_space<vmem>>, %arg7: memref<64x128xf32, #tpu.memory_space<vmem>>, %arg8: memref<1x128xf32, #tpu.memory_space<vmem>>, %arg9: memref<64x128xf32, #tpu.memory_space<vmem>>, %arg10: memref<1x128xf32, #tpu.memory_space<vmem>>, %arg11: memref<24x128xf32, #tpu.memory_space<vmem>>, %arg12: memref<24x128xf32, #tpu.memory_space<vmem>>) attributes {dimension_semantics = [#tpu.dimension_semantics<parallel>, #tpu.dimension_semantics<parallel>], iteration_bounds = array<i64: 1, 1>, scalar_prefetch = 0 : i64, scratch_operands = 0 : i64, tpu.core_type = #tpu.core_type<tc>, window_params = [{transform_indices = @transform_0, window_bounds = array<i64: 24, 32>}, {pipeline_mode = #tpu.pipeline_mode<synchronous>, transform_indices = @transform_1, window_bounds = array<i64: 32, 32>}, {pipeline_mode = #tpu.pipeline_mode<synchronous>, transform_indices = @transform_2, window_bounds = array<i64: 1, 32>}, {pipeline_mode = #tpu.pipeline_mode<synchronous>, transform_indices = @transform_3, window_bounds = array<i64: 32, 64>}, {pipeline_mode = #tpu.pipeline_mode<synchronous>, transform_indices = @transform_4, window_bounds = array<i64: 1, 64>}, {transform_indices = @transform_5, window_bounds = array<i64: 64, 128>}, {transform_indices = @transform_6, window_bounds = array<i64: 1, 128>}, {transform_indices = @transform_7, window_bounds = array<i64: 64, 128>}, {transform_indices = @transform_8, window_bounds = array<i64: 1, 128>}, {transform_indices = @transform_9, window_bounds = array<i64: 24, 128>}, {transform_indices = @transform_10, window_bounds = array<i64: 24, 128>}]} {
    %c0 = arith.constant 0 : index
    %c0_0 = arith.constant 0 : index
    %0 = vector.load %arg2[%c0, %c0_0] : memref<24x32xf32, #tpu.memory_space<vmem>>, vector<24x32xf32>
    %c0_1 = arith.constant 0 : index
    %c0_2 = arith.constant 0 : index
    %1 = vector.load %arg3[%c0_1, %c0_2] : memref<32x32xf32, #tpu.memory_space<vmem>>, vector<32x32xf32>
    %cst = arith.constant dense<0.000000e+00> : vector<24x32xf32>
    %2 = tpu.matmul %0, %1, %cst {dimension_numbers = #tpu.dot_dimension_numbers<[1], [0], [0], [1], [0, 0, 1, 1], [], []>} : vector<24x32xf32>, vector<32x32xf32>, vector<24x32xf32> -> vector<24x32xf32>
    %c0_3 = arith.constant 0 : index
    %c0_4 = arith.constant 0 : index
    %3 = vector.load %arg4[%c0_3, %c0_4] : memref<1x32xf32, #tpu.memory_space<vmem>>, vector<1x32xf32>
    %4 = vector.broadcast %3 : vector<1x32xf32> to vector<24x32xf32>
    %5 = arith.addf %2, %4 : vector<24x32xf32>
    %cst_5 = arith.constant 0.000000e+00 : f32
    %6 = vector.broadcast %cst_5 : f32 to vector<24x32xf32>
    %7 = arith.maximumf %5, %6 : vector<24x32xf32>
    %c0_6 = arith.constant 0 : index
    %c0_7 = arith.constant 0 : index
    %8 = vector.load %arg5[%c0_6, %c0_7] : memref<32x64xf32, #tpu.memory_space<vmem>>, vector<32x64xf32>
    %cst_8 = arith.constant dense<0.000000e+00> : vector<24x64xf32>
    %9 = tpu.matmul %7, %8, %cst_8 {dimension_numbers = #tpu.dot_dimension_numbers<[1], [0], [0], [1], [0, 0, 1, 1], [], []>} : vector<24x32xf32>, vector<32x64xf32>, vector<24x64xf32> -> vector<24x64xf32>
    %c0_9 = arith.constant 0 : index
    %c0_10 = arith.constant 0 : index
    %10 = vector.load %arg6[%c0_9, %c0_10] : memref<1x64xf32, #tpu.memory_space<vmem>>, vector<1x64xf32>
    %11 = vector.broadcast %10 : vector<1x64xf32> to vector<24x64xf32>
    %12 = arith.addf %9, %11 : vector<24x64xf32>
    %cst_11 = arith.constant 0.000000e+00 : f32
    %13 = vector.broadcast %cst_11 : f32 to vector<24x64xf32>
    %14 = arith.maximumf %12, %13 : vector<24x64xf32>
    %c0_12 = arith.constant 0 : index
    %c0_13 = arith.constant 0 : index
    %15 = vector.load %arg7[%c0_12, %c0_13] : memref<64x128xf32, #tpu.memory_space<vmem>>, vector<64x128xf32>
    %cst_14 = arith.constant dense<0.000000e+00> : vector<24x128xf32>
    %16 = tpu.matmul %14, %15, %cst_14 {dimension_numbers = #tpu.dot_dimension_numbers<[1], [0], [0], [1], [0, 0, 1, 1], [], []>} : vector<24x64xf32>, vector<64x128xf32>, vector<24x128xf32> -> vector<24x128xf32>
    %c0_15 = arith.constant 0 : index
    %c0_16 = arith.constant 0 : index
    %17 = vector.load %arg8[%c0_15, %c0_16] : memref<1x128xf32, #tpu.memory_space<vmem>>, vector<1x128xf32>
    %18 = vector.broadcast %17 : vector<1x128xf32> to vector<24x128xf32>
    %19 = arith.addf %16, %18 : vector<24x128xf32>
    %c0_17 = arith.constant 0 : index
    %c0_18 = arith.constant 0 : index
    %20 = vector.load %arg12[%c0_17, %c0_18] : memref<24x128xf32, #tpu.memory_space<vmem>>, vector<24x128xf32>
    tpu.vector_store %arg12[%c0_17, %c0_18], %19 {strides = array<i32>} : memref<24x128xf32, #tpu.memory_space<vmem>>, vector<24x128xf32>,
    %c0_19 = arith.constant 0 : index
    %c0_20 = arith.constant 0 : index
    %21 = vector.load %arg9[%c0_19, %c0_20] : memref<64x128xf32, #tpu.memory_space<vmem>>, vector<64x128xf32>
    %cst_21 = arith.constant dense<0.000000e+00> : vector<24x128xf32>
    %22 = tpu.matmul %14, %21, %cst_21 {dimension_numbers = #tpu.dot_dimension_numbers<[1], [0], [0], [1], [0, 0, 1, 1], [], []>} : vector<24x64xf32>, vector<64x128xf32>, vector<24x128xf32> -> vector<24x128xf32>
    %c0_22 = arith.constant 0 : index
    %c0_23 = arith.constant 0 : index
    %23 = vector.load %arg10[%c0_22, %c0_23] : memref<1x128xf32, #tpu.memory_space<vmem>>, vector<1x128xf32>
    %24 = vector.broadcast %23 : vector<1x128xf32> to vector<24x128xf32>
    %25 = arith.addf %22, %24 : vector<24x128xf32>
    %c0_24 = arith.constant 0 : index
    %c0_25 = arith.constant 0 : index
    %26 = vector.load %arg11[%c0_24, %c0_25] : memref<24x128xf32, #tpu.memory_space<vmem>>, vector<24x128xf32>
    tpu.vector_store %arg11[%c0_24, %c0_25], %25 {strides = array<i32>} : memref<24x128xf32, #tpu.memory_space<vmem>>, vector<24x128xf32>,
    return
  }
  func.func @transform_0(%arg0: i32, %arg1: i32) -> (i32, i32) {
    %c0_i32 = arith.constant 0 : i32
    %c0_i32_0 = arith.constant 0 : i32
    return %arg1, %c0_i32 : i32, i32
  }
  func.func @transform_1(%arg0: i32, %arg1: i32) -> (i32, i32) {
    %c0_i32 = arith.constant 0 : i32
    %c0_i32_0 = arith.constant 0 : i32
    %c0_i32_1 = arith.constant 0 : i32
    return %c0_i32, %c0_i32_0 : i32, i32
  }
  func.func @transform_2(%arg0: i32, %arg1: i32) -> (i32, i32) {
    %c0_i32 = arith.constant 0 : i32
    %c0_i32_0 = arith.constant 0 : i32
    %c0_i32_1 = arith.constant 0 : i32
    return %c0_i32, %c0_i32_0 : i32, i32
  }
  func.func @transform_3(%arg0: i32, %arg1: i32) -> (i32, i32) {
    %c0_i32 = arith.constant 0 : i32
    %c0_i32_0 = arith.constant 0 : i32
    %c0_i32_1 = arith.constant 0 : i32
    return %c0_i32, %c0_i32_0 : i32, i32
  }
  func.func @transform_4(%arg0: i32, %arg1: i32) -> (i32, i32) {
    %c0_i32 = arith.constant 0 : i32
    %c0_i32_0 = arith.constant 0 : i32
    %c0_i32_1 = arith.constant 0 : i32
    return %c0_i32, %c0_i32_0 : i32, i32
  }
  func.func @transform_5(%arg0: i32, %arg1: i32) -> (i32, i32) {
    %c0_i32 = arith.constant 0 : i32
    %c0_i32_0 = arith.constant 0 : i32
    return %c0_i32, %arg0 : i32, i32
  }
  func.func @transform_6(%arg0: i32, %arg1: i32) -> (i32, i32) {
    %c0_i32 = arith.constant 0 : i32
    %c0_i32_0 = arith.constant 0 : i32
    return %c0_i32, %arg0 : i32, i32
  }
  func.func @transform_7(%arg0: i32, %arg1: i32) -> (i32, i32) {
    %c0_i32 = arith.constant 0 : i32
    %c0_i32_0 = arith.constant 0 : i32
    return %c0_i32, %arg0 : i32, i32
  }
  func.func @transform_8(%arg0: i32, %arg1: i32) -> (i32, i32) {
    %c0_i32 = arith.constant 0 : i32
    %c0_i32_0 = arith.constant 0 : i32
    return %c0_i32, %arg0 : i32, i32
  }
  func.func @transform_9(%arg0: i32, %arg1: i32) -> (i32, i32) {
    %c0_i32 = arith.constant 0 : i32
    return %arg1, %arg0 : i32, i32
  }
  func.func @transform_10(%arg0: i32, %arg1: i32) -> (i32, i32) {
    %c0_i32 = arith.constant 0 : i32
    return %arg1, %arg0 : i32, i32
  }
}

</mosaic_0001>

<llo_original>
// kernel: _zinb_decoder_pallas.1
$region0: #{_zinb_decoder_pallas.1}
  #allocation0 [shape = 'u32[]', space=smem, size = 0x4, offset = 0x4, fixed_abs, tag = 'smem constant byte address 0x4 - core index']
  #allocation1 [shape = 'u32[144,128]{1,0:T(1,128)}', space=vmem, size = 0x12000, scoped, tag = 'internal scratch']
  %s0 = inlined_call_operand.vmem [shape: f32[24,32], index: 0, kind: input, shape index: {}]
  %s1 = inlined_call_operand.vmem [shape: f32[32,32], index: 1, kind: input, shape index: {}]
  %s2 = inlined_call_operand.vmem [shape: f32[1,32], index: 2, kind: input, shape index: {}]
  %s3 = inlined_call_operand.hbm [shape: f32[32,64], index: 3, kind: input, shape index: {}]
  %s4 = inlined_call_operand.vmem [shape: f32[1,64], index: 4, kind: input, shape index: {}]
  %s5 = inlined_call_operand.hbm [shape: f32[64,128], index: 5, kind: input, shape index: {}]
  %s6 = inlined_call_operand.vmem [shape: f32[1,128], index: 6, kind: input, shape index: {}]
  %s7 = inlined_call_operand.hbm [shape: f32[64,128], index: 7, kind: input, shape index: {}]
  %s8 = inlined_call_operand.vmem [shape: f32[1,128], index: 8, kind: input, shape index: {}]
  %s9 = inlined_call_operand.vmem [shape: f32[24,128], index: 9, kind: output, shape index: {0}]
  %s10 = inlined_call_operand.vmem [shape: f32[24,128], index: 10, kind: output, shape index: {1}]
  %11 = xla_tuple %s9, %s10
  %s12 = sld [smem:[#allocation0]]
  $region66: #{_zinb_decoder_pallas.1} parent=0
    _
  %s14 = ssub.s32 1, %s12
  %s15 = scalar_select 0, %s14, %s12
  $region1: #{_zinb_decoder_pallas.1} parent=0
    #allocation2 [shape = 'u8[16384]{0}', space=vmem, size = 0x4000, scoped, tag = 'input window, operand 3, single buffered']
    #allocation3 [shape = 's32[1]{0}', space=sflag, size = 0x4, scoped, tag = 'scoped memory for _zinb_decoder_pallas.1']
    #allocation4 [shape = 'u8[32768]{0}', space=vmem, size = 0x8000, scoped, tag = 'input window, operand 5, single buffered']
    #allocation5 [shape = 's32[1]{0}', space=sflag, size = 0x4, scoped, tag = 'scoped memory for _zinb_decoder_pallas.1']
    #allocation6 [shape = 'u8[32768]{0}', space=vmem, size = 0x8000, scoped, tag = 'input window, operand 7, single buffered']
    %16 = vsyncpa [#allocation3], 0
    %17 = vsyncpa [#allocation5], 0
    // Predicated region
    $region2: #{_zinb_decoder_pallas.1} parent=1 // pred_check
      _
    $region3: #{_zinb_decoder_pallas.1} parent=1 // pred_check_branch
      %19 = sbr.rel (0) target = $region5
    $region4: #{_zinb_decoder_pallas.1} parent=1 // pred_region
      _
    $region5: #{_zinb_decoder_pallas.1} parent=1 // pred_fallthru
      _
    // Predicated region
    $region6: #{_zinb_decoder_pallas.1} parent=1 // pred_check
      _
    $region7: #{_zinb_decoder_pallas.1} parent=1 // pred_check_branch
      %21 = sbr.rel (0) target = $region9
    $region8: #{_zinb_decoder_pallas.1} parent=1 // pred_region
      _
    $region9: #{_zinb_decoder_pallas.1} parent=1 // pred_fallthru
      _
    // Predicated region
    $region10: #{_zinb_decoder_pallas.1} parent=1 // pred_check
      _
    $region11: #{_zinb_decoder_pallas.1} parent=1 // pred_check_branch
      %23 = sbr.rel (0) target = $region13
    $region12: #{_zinb_decoder_pallas.1} parent=1 // pred_region
      _
    $region13: #{_zinb_decoder_pallas.1} parent=1 // pred_fallthru
      _
    // Predicated region
    $region14: #{_zinb_decoder_pallas.1} parent=1 // pred_check
      _
    $region15: #{_zinb_decoder_pallas.1} parent=1 // pred_check_branch
      %25 = sbr.rel (0) target = $region17
    $region16: #{_zinb_decoder_pallas.1} parent=1 // pred_region
      %s27 = ssub.s32 512, 512
      %28 = vsyncadd [#allocation3], %s27
      %s29 = sshll.u32 [#allocation2], 4
      %s30 = int_to_ptr.vmem [resolvable:$true] %s29
      %35 = dma.hbm_to_vmem [thread:$0]  %s3, 512, %s30, [#allocation3], 128, 128, 8
    $region17: #{_zinb_decoder_pallas.1} parent=1 // pred_fallthru
      _
    // Predicated region
    $region18: #{_zinb_decoder_pallas.1} parent=1 // pred_check
      _
    $region19: #{_zinb_decoder_pallas.1} parent=1 // pred_check_branch
      %37 = sbr.rel (0) target = $region21
    $region20: #{_zinb_decoder_pallas.1} parent=1 // pred_region
      _
    $region21: #{_zinb_decoder_pallas.1} parent=1 // pred_fallthru
      _
    // Predicated region
    $region22: #{_zinb_decoder_pallas.1} parent=1 // pred_check
      _
    $region23: #{_zinb_decoder_pallas.1} parent=1 // pred_check_branch
      %39 = sbr.rel (0) target = $region25
    $region24: #{_zinb_decoder_pallas.1} parent=1 // pred_region
      %s41 = ssub.s32 1024, 1024
      %42 = vsyncadd [#allocation5], %s41
      %s43 = sshll.u32 [#allocation4], 4
      %s44 = int_to_ptr.vmem [resolvable:$true] %s43
      %49 = dma.hbm_to_vmem [thread:$0]  %s5, 1024, %s44, [#allocation5], 128, 128, 8
    $region25: #{_zinb_decoder_pallas.1} parent=1 // pred_fallthru
      _
    // Predicated region
    $region26: #{_zinb_decoder_pallas.1} parent=1 // pred_check
      _
    $region27: #{_zinb_decoder_pallas.1} parent=1 // pred_check_branch
      %51 = sbr.rel (0) target = $region29
    $region28: #{_zinb_decoder_pallas.1} parent=1 // pred_region
      _
    $region29: #{_zinb_decoder_pallas.1} parent=1 // pred_fallthru
      _
    // Predicated region
    $region30: #{_zinb_decoder_pallas.1} parent=1 // pred_check
      _
    $region31: #{_zinb_decoder_pallas.1} parent=1 // pred_check_branch
      %53 = sbr.rel (0) target = $region33
    $region32: #{_zinb_decoder_pallas.1} parent=1 // pred_region
      %s55 = ssub.s32 1024, 1024
      %56 = vsyncadd [#allocation5], %s55
      %s57 = sshll.u32 [#allocation6], 4
      %s58 = int_to_ptr.vmem [resolvable:$true] %s57
      %63 = dma.hbm_to_vmem [thread:$0]  %s7, 1024, %s58, [#allocation5], 128, 128, 8
    $region33: #{_zinb_decoder_pallas.1} parent=1 // pred_fallthru
      _
    // Predicated region
    $region34: #{_zinb_decoder_pallas.1} parent=1 // pred_check
      _
    $region35: #{_zinb_decoder_pallas.1} parent=1 // pred_check_branch
      %65 = sbr.rel (0) target = $region37
    $region36: #{_zinb_decoder_pallas.1} parent=1 // pred_region
      _
    $region37: #{_zinb_decoder_pallas.1} parent=1 // pred_fallthru
      _
    // Predicated region
    $region38: #{_zinb_decoder_pallas.1} parent=1 // pred_check
      _
    $region39: #{_zinb_decoder_pallas.1} parent=1 // pred_check_branch
      %67 = sbr.rel (0) target = $region41
    $region40: #{_zinb_decoder_pallas.1} parent=1 // pred_region
      %68 = dma.done [#allocation3], 512
    $region41: #{_zinb_decoder_pallas.1} parent=1 // pred_fallthru
      _
    // Predicated region
    $region42: #{_zinb_decoder_pallas.1} parent=1 // pred_check
      _
    $region43: #{_zinb_decoder_pallas.1} parent=1 // pred_check_branch
      %70 = sbr.rel (0) target = $region45
    $region44: #{_zinb_decoder_pallas.1} parent=1 // pred_region
      %71 = dma.done [#allocation5], 1024
    $region45: #{_zinb_decoder_pallas.1} parent=1 // pred_fallthru
      _
    // Predicated region
    $region46: #{_zinb_decoder_pallas.1} parent=1 // pred_check
      _
    $region47: #{_zinb_decoder_pallas.1} parent=1 // pred_check_branch
      %73 = sbr.rel (0) target = $region49
    $region48: #{_zinb_decoder_pallas.1} parent=1 // pred_region
      %74 = dma.done [#allocation5], 1024
    $region49: #{_zinb_decoder_pallas.1} parent=1 // pred_fallthru
      _
    %v75 = vld [vmem:[%s0] sm:$0xff]
    %v76 = vld [vmem:[%s0 + $0x8] sm:$0xff]
    %v77 = vld [vmem:[%s0 + $0x10] sm:$0xff]
    %v78 = vld [vmem:[%s1] sm:$0xff]
    %v79 = vld [vmem:[%s1 + $0x8] sm:$0xff]
    %v80 = vld [vmem:[%s1 + $0x10] sm:$0xff]
    %v81 = vld [vmem:[%s1 + $0x18] sm:$0xff]
    %v82 = vld [vmem:[%s2] sm:$0x1]
    %v84 = vlaneseq
    %v85 = vshrl.u32 %v84, 7
    %v86 = vsub.s32 0, %v85
    %v87 = vrot.slane %v82, %v86
    %vm89 = vcmask 261120
    %v91 = vsel %vm89, %v75, 0
    %v94 = vsel %vm89, %v76, 0
    %v97 = vsel %vm89, %v77, 0
    %99 = vmatprep.subr.mxu0 0.0
    %100 = vmatpush1.msra.mxu0 0.0
    %101 = vmatprep.subr.mxu0 0.0
    %102 = vmatpush1.msra.mxu0 0.0
    %103 = vmatprep.subr.mxu0 0.0
    %104 = vmatpush1.msra.mxu0 0.0
    %105 = vmatprep.subr.mxu0 0.0
    %106 = vmatpush1.msra.mxu0 0.0
    %107 = vmatprep.subr.mxu0 0.0
    %108 = vmatpush1.msra.mxu0 0.0
    %109 = vmatprep.subr.mxu0 0.0
    %110 = vmatpush1.msra.mxu0 0.0
    %111 = vmatprep.subr.mxu0 0.0
    %112 = vmatpush1.msra.mxu0 0.0
    %113 = vmatprep.subr.mxu0 0.0
    %114 = vmatpush1.msra.mxu0 0.0
    %115 = vmatprep.subr.mxu0 0.0
    %116 = vmatpush1.msra.mxu0 0.0
    %117 = vmatprep.subr.mxu0 0.0
    %118 = vmatpush1.msra.mxu0 0.0
    %119 = vmatprep.subr.mxu0 0.0
    %120 = vmatpush1.msra.mxu0 0.0
    %121 = vmatprep.subr.mxu0 0.0
    %122 = vmatpush1.msra.mxu0 0.0
    %123 = vmatprep.subr.mxu0 0.0
    %124 = vmatpush1.msra.mxu0 %v81
    %125 = vmatprep.subr.mxu0 0.0
    %126 = vmatpush1.msra.mxu0 %v80
    %127 = vmatprep.subr.mxu0 0.0
    %128 = vmatpush1.msra.mxu0 %v79
    %129 = vmatprep.subr.mxu0 0.0
    %130 = vmatpush1.msra.mxu0 %v78
    %131 = vmatprep.subr.mxu0 0.0
    %132 = vmatpush2.msra.mxu0 0.0
    %133 = vmatprep.subr.mxu0 0.0
    %134 = vmatpush2.msra.mxu0 0.0
    %135 = vmatprep.subr.mxu0 0.0
    %136 = vmatpush2.msra.mxu0 0.0
    %137 = vmatprep.subr.mxu0 0.0
    %138 = vmatpush2.msra.mxu0 0.0
    %139 = vmatprep.subr.mxu0 0.0
    %140 = vmatpush2.msra.mxu0 0.0
    %141 = vmatprep.subr.mxu0 0.0
    %142 = vmatpush2.msra.mxu0 0.0
    %143 = vmatprep.subr.mxu0 0.0
    %144 = vmatpush2.msra.mxu0 0.0
    %145 = vmatprep.subr.mxu0 0.0
    %146 = vmatpush2.msra.mxu0 0.0
    %147 = vmatprep.subr.mxu0 0.0
    %148 = vmatpush2.msra.mxu0 0.0
    %149 = vmatprep.subr.mxu0 0.0
    %150 = vmatpush2.msra.mxu0 0.0
    %151 = vmatprep.subr.mxu0 0.0
    %152 = vmatpush2.msra.mxu0 0.0
    %153 = vmatprep.subr.mxu0 0.0
    %154 = vmatpush2.msra.mxu0 0.0
    %155 = vmatprep.subr.mxu0 0.0
    %156 = vmatpush2.msra.mxu0 0.0
    %157 = vmatprep.subr.mxu0 0.0
    %158 = vmatpush2.msra.mxu0 0.0
    %159 = vmatprep.subr.mxu0 0.0
    %160 = vmatpush2.msra.mxu0 0.0
    %161 = vmatprep.subr.mxu0 0.0
    %162 = vmatpush2.msra.mxu0 0.0
    %163 = vmatprep.mubr.f32.mxu0 0.0
    %164 = vmatmul.mubr.f32.gmra.mxu0 %v91
    %v165 = vpop.f32.mrf.mxu0
    %v166 = vadd.f32 %v87, %v165
    %v167 = vpop.f32.mrf.mxu0
    %168 = vmatprep.mubr.f32.mxu0 0.0
    %169 = vmatmul.mubr.f32.gmra.mxu0 %v94
    %v170 = vpop.f32.mrf.mxu0
    %v171 = vadd.f32 %v87, %v170
    %v172 = vpop.f32.mrf.mxu0
    %173 = vmatprep.mubr.f32.mxu0 0.0
    %174 = vmatmul.mubr.f32.gmra.mxu0 %v97
    %v175 = vpop.f32.mrf.mxu0
    %v176 = vadd.f32 %v87, %v175
    %v177 = vpop.f32.mrf.mxu0
    %178 = vdwg.mxu0
    %v179 = vmax.f32 %v166, 0.0
    %v180 = vmax.f32 %v171, 0.0
    %v181 = vmax.f32 %v176, 0.0
    %v182 = vld [vmem:[#allocation2] sm:$0xff]
    %v183 = vld [vmem:[#allocation2 + $0x8] sm:$0xff]
    %v184 = vld [vmem:[#allocation2 + $0x10] sm:$0xff]
    %v185 = vld [vmem:[#allocation2 + $0x18] sm:$0xff]
    %v186 = vld [vmem:[%s4] sm:$0x1]
    %v188 = vlaneseq
    %v189 = vshrl.u32 %v188, 7
    %v190 = vsub.s32 0, %v189
    %v191 = vrot.slane %v186, %v190
    %v194 = vsel %vm89, %v179, 0
    %v197 = vsel %vm89, %v180, 0
    %v200 = vsel %vm89, %v181, 0
    %202 = vmatprep.subr.mxu0 0.0
    %203 = vmatpush1.msra.mxu0 0.0
    %204 = vmatprep.subr.mxu0 0.0
    %205 = vmatpush1.msra.mxu0 0.0
    %206 = vmatprep.subr.mxu0 0.0
    %207 = vmatpush1.msra.mxu0 0.0
    %208 = vmatprep.subr.mxu0 0.0
    %209 = vmatpush1.msra.mxu0 0.0
    %210 = vmatprep.subr.mxu0 0.0
    %211 = vmatpush1.msra.mxu0 0.0
    %212 = vmatprep.subr.mxu0 0.0
    %213 = vmatpush1.msra.mxu0 0.0
    %214 = vmatprep.subr.mxu0 0.0
    %215 = vmatpush1.msra.mxu0 0.0
    %216 = vmatprep.subr.mxu0 0.0
    %217 = vmatpush1.msra.mxu0 0.0
    %218 = vmatprep.subr.mxu0 0.0
    %219 = vmatpush1.msra.mxu0 0.0
    %220 = vmatprep.subr.mxu0 0.0
    %221 = vmatpush1.msra.mxu0 0.0
    %222 = vmatprep.subr.mxu0 0.0
    %223 = vmatpush1.msra.mxu0 0.0
    %224 = vmatprep.subr.mxu0 0.0
    %225 = vmatpush1.msra.mxu0 0.0
    %226 = vmatprep.subr.mxu0 0.0
    %227 = vmatpush1.msra.mxu0 %v185
    %228 = vmatprep.subr.mxu0 0.0
    %229 = vmatpush1.msra.mxu0 %v184
    %230 = vmatprep.subr.mxu0 0.0
    %231 = vmatpush1.msra.mxu0 %v183
    %232 = vmatprep.subr.mxu0 0.0
    %233 = vmatpush1.msra.mxu0 %v182
    %234 = vmatprep.subr.mxu0 0.0
    %235 = vmatpush2.msra.mxu0 0.0
    %236 = vmatprep.subr.mxu0 0.0
    %237 = vmatpush2.msra.mxu0 0.0
    %238 = vmatprep.subr.mxu0 0.0
    %239 = vmatpush2.msra.mxu0 0.0
    %240 = vmatprep.subr.mxu0 0.0
    %241 = vmatpush2.msra.mxu0 0.0
    %242 = vmatprep.subr.mxu0 0.0
    %243 = vmatpush2.msra.mxu0 0.0
    %244 = vmatprep.subr.mxu0 0.0
    %245 = vmatpush2.msra.mxu0 0.0
    %246 = vmatprep.subr.mxu0 0.0
    %247 = vmatpush2.msra.mxu0 0.0
    %248 = vmatprep.subr.mxu0 0.0
    %249 = vmatpush2.msra.mxu0 0.0
    %250 = vmatprep.subr.mxu0 0.0
    %251 = vmatpush2.msra.mxu0 0.0
    %252 = vmatprep.subr.mxu0 0.0
    %253 = vmatpush2.msra.mxu0 0.0
    %254 = vmatprep.subr.mxu0 0.0
    %255 = vmatpush2.msra.mxu0 0.0
    %256 = vmatprep.subr.mxu0 0.0
    %257 = vmatpush2.msra.mxu0 0.0
    %258 = vmatprep.subr.mxu0 0.0
    %259 = vmatpush2.msra.mxu0 0.0
    %260 = vmatprep.subr.mxu0 0.0
    %261 = vmatpush2.msra.mxu0 0.0
    %262 = vmatprep.subr.mxu0 0.0
    %263 = vmatpush2.msra.mxu0 0.0
    %264 = vmatprep.subr.mxu0 0.0
    %265 = vmatpush2.msra.mxu0 0.0
    %266 = vmatprep.mubr.f32.mxu0 0.0
    %267 = vmatmul.mubr.f32.gmra.mxu0 %v194
    %v268 = vpop.f32.mrf.mxu0
    %v269 = vadd.f32 %v191, %v268
    %v270 = vpop.f32.mrf.mxu0
    %271 = vmatprep.mubr.f32.mxu0 0.0
    %272 = vmatmul.mubr.f32.gmra.mxu0 %v197
    %v273 = vpop.f32.mrf.mxu0
    %v274 = vadd.f32 %v191, %v273
    %v275 = vpop.f32.mrf.mxu0
    %276 = vmatprep.mubr.f32.mxu0 0.0
    %277 = vmatmul.mubr.f32.gmra.mxu0 %v200
    %v278 = vpop.f32.mrf.mxu0
    %v279 = vadd.f32 %v191, %v278
    %v280 = vpop.f32.mrf.mxu0
    %281 = vdwg.mxu0
    %v282 = vmax.f32 %v269, 0.0
    %v283 = vmax.f32 %v274, 0.0
    %v284 = vmax.f32 %v279, 0.0
    %v285 = vld [vmem:[#allocation4] sm:$0xff]
    %v286 = vld [vmem:[#allocation4 + $0x8] sm:$0xff]
    %v287 = vld [vmem:[#allocation4 + $0x10] sm:$0xff]
    %v288 = vld [vmem:[#allocation4 + $0x18] sm:$0xff]
    %v289 = vld [vmem:[#allocation4 + $0x20] sm:$0xff]
    %v290 = vld [vmem:[#allocation4 + $0x28] sm:$0xff]
    %v291 = vld [vmem:[#allocation4 + $0x30] sm:$0xff]
    %v292 = vld [vmem:[#allocation4 + $0x38] sm:$0xff]
    %v293 = vld [vmem:[%s6] sm:$0x1]
    %v295 = vlaneseq
    %v296 = vshrl.u32 %v295, 7
    %v297 = vsub.s32 0, %v296
    %v298 = vrot.slane %v293, %v297
    %vm300 = vcmask 523264
    %v302 = vsel %vm300, %v282, 0
    %v305 = vsel %vm300, %v283, 0
    %v308 = vsel %vm300, %v284, 0
    %310 = vmatprep.subr.mxu0 0.0
    %311 = vmatpush1.msra.mxu0 0.0
    %312 = vmatprep.subr.mxu0 0.0
    %313 = vmatpush1.msra.mxu0 0.0
    %314 = vmatprep.subr.mxu0 0.0
    %315 = vmatpush1.msra.mxu0 0.0
    %316 = vmatprep.subr.mxu0 0.0
    %317 = vmatpush1.msra.mxu0 0.0
    %318 = vmatprep.subr.mxu0 0.0
    %319 = vmatpush1.msra.mxu0 0.0
    %320 = vmatprep.subr.mxu0 0.0
    %321 = vmatpush1.msra.mxu0 0.0
    %322 = vmatprep.subr.mxu0 0.0
    %323 = vmatpush1.msra.mxu0 0.0
    %324 = vmatprep.subr.mxu0 0.0
    %325 = vmatpush1.msra.mxu0 0.0
    %326 = vmatprep.subr.mxu0 0.0
    %327 = vmatpush1.msra.mxu0 %v292
    %328 = vmatprep.subr.mxu0 0.0
    %329 = vmatpush1.msra.mxu0 %v291
    %330 = vmatprep.subr.mxu0 0.0
    %331 = vmatpush1.msra.mxu0 %v290
    %332 = vmatprep.subr.mxu0 0.0
    %333 = vmatpush1.msra.mxu0 %v289
    %334 = vmatprep.subr.mxu0 0.0
    %335 = vmatpush1.msra.mxu0 %v288
    %336 = vmatprep.subr.mxu0 0.0
    %337 = vmatpush1.msra.mxu0 %v287
    %338 = vmatprep.subr.mxu0 0.0
    %339 = vmatpush1.msra.mxu0 %v286
    %340 = vmatprep.subr.mxu0 0.0
    %341 = vmatpush1.msra.mxu0 %v285
    %342 = vmatprep.subr.mxu0 0.0
    %343 = vmatpush2.msra.mxu0 0.0
    %344 = vmatprep.subr.mxu0 0.0
    %345 = vmatpush2.msra.mxu0 0.0
    %346 = vmatprep.subr.mxu0 0.0
    %347 = vmatpush2.msra.mxu0 0.0
    %348 = vmatprep.subr.mxu0 0.0
    %349 = vmatpush2.msra.mxu0 0.0
    %350 = vmatprep.subr.mxu0 0.0
    %351 = vmatpush2.msra.mxu0 0.0
    %352 = vmatprep.subr.mxu0 0.0
    %353 = vmatpush2.msra.mxu0 0.0
    %354 = vmatprep.subr.mxu0 0.0
    %355 = vmatpush2.msra.mxu0 0.0
    %356 = vmatprep.subr.mxu0 0.0
    %357 = vmatpush2.msra.mxu0 0.0
    %358 = vmatprep.subr.mxu0 0.0
    %359 = vmatpush2.msra.mxu0 0.0
    %360 = vmatprep.subr.mxu0 0.0
    %361 = vmatpush2.msra.mxu0 0.0
    %362 = vmatprep.subr.mxu0 0.0
    %363 = vmatpush2.msra.mxu0 0.0
    %364 = vmatprep.subr.mxu0 0.0
    %365 = vmatpush2.msra.mxu0 0.0
    %366 = vmatprep.subr.mxu0 0.0
    %367 = vmatpush2.msra.mxu0 0.0
    %368 = vmatprep.subr.mxu0 0.0
    %369 = vmatpush2.msra.mxu0 0.0
    %370 = vmatprep.subr.mxu0 0.0
    %371 = vmatpush2.msra.mxu0 0.0
    %372 = vmatprep.subr.mxu0 0.0
    %373 = vmatpush2.msra.mxu0 0.0
    %374 = vmatprep.mubr.f32.mxu0 0.0
    %375 = vmatmul.mubr.f32.gmra.mxu0 %v302
    %v376 = vpop.f32.mrf.mxu0
    %v377 = vadd.f32 %v298, %v376
    %v378 = vpop.f32.mrf.mxu0
    %379 = vmatprep.mubr.f32.mxu0 0.0
    %380 = vmatmul.mubr.f32.gmra.mxu0 %v305
    %v381 = vpop.f32.mrf.mxu0
    %v382 = vadd.f32 %v298, %v381
    %v383 = vpop.f32.mrf.mxu0
    %384 = vmatprep.mubr.f32.mxu0 0.0
    %385 = vmatmul.mubr.f32.gmra.mxu0 %v308
    %v386 = vpop.f32.mrf.mxu0
    %v387 = vadd.f32 %v298, %v386
    %v388 = vpop.f32.mrf.mxu0
    %389 = vdwg.mxu0
    %390 = vst [vmem:[%s10] sm:$0xff] %v377
    %391 = vst [vmem:[%s10 + $0x8] sm:$0xff] %v382
    %392 = vst [vmem:[%s10 + $0x10] sm:$0xff] %v387
    %v393 = vld [vmem:[#allocation6] sm:$0xff]
    %v394 = vld [vmem:[#allocation6 + $0x8] sm:$0xff]
    %v395 = vld [vmem:[#allocation6 + $0x10] sm:$0xff]
    %v396 = vld [vmem:[#allocation6 + $0x18] sm:$0xff]
    %v397 = vld [vmem:[#allocation6 + $0x20] sm:$0xff]
    %v398 = vld [vmem:[#allocation6 + $0x28] sm:$0xff]
    %v399 = vld [vmem:[#allocation6 + $0x30] sm:$0xff]
    %v400 = vld [vmem:[#allocation6 + $0x38] sm:$0xff]
    %v401 = vld [vmem:[%s8] sm:$0x1]
    %v403 = vlaneseq
    %v404 = vshrl.u32 %v403, 7
    %v405 = vsub.s32 0, %v404
    %v406 = vrot.slane %v401, %v405
    %408 = vmatprep.subr.mxu0 0.0
    %409 = vmatpush1.msra.mxu0 0.0
    %410 = vmatprep.subr.mxu0 0.0
    %411 = vmatpush1.msra.mxu0 0.0
    %412 = vmatprep.subr.mxu0 0.0
    %413 = vmatpush1.msra.mxu0 0.0
    %414 = vmatprep.subr.mxu0 0.0
    %415 = vmatpush1.msra.mxu0 0.0
    %416 = vmatprep.subr.mxu0 0.0
    %417 = vmatpush1.msra.mxu0 0.0
    %418 = vmatprep.subr.mxu0 0.0
    %419 = vmatpush1.msra.mxu0 0.0
    %420 = vmatprep.subr.mxu0 0.0
    %421 = vmatpush1.msra.mxu0 0.0
    %422 = vmatprep.subr.mxu0 0.0
    %423 = vmatpush1.msra.mxu0 0.0
    %424 = vmatprep.subr.mxu0 0.0
    %425 = vmatpush1.msra.mxu0 %v400
    %426 = vmatprep.subr.mxu0 0.0
    %427 = vmatpush1.msra.mxu0 %v399
    %428 = vmatprep.subr.mxu0 0.0
    %429 = vmatpush1.msra.mxu0 %v398
    %430 = vmatprep.subr.mxu0 0.0
    %431 = vmatpush1.msra.mxu0 %v397
    %432 = vmatprep.subr.mxu0 0.0
    %433 = vmatpush1.msra.mxu0 %v396
    %434 = vmatprep.subr.mxu0 0.0
    %435 = vmatpush1.msra.mxu0 %v395
    %436 = vmatprep.subr.mxu0 0.0
    %437 = vmatpush1.msra.mxu0 %v394
    %438 = vmatprep.subr.mxu0 0.0
    %439 = vmatpush1.msra.mxu0 %v393
    %440 = vmatprep.subr.mxu0 0.0
    %441 = vmatpush2.msra.mxu0 0.0
    %442 = vmatprep.subr.mxu0 0.0
    %443 = vmatpush2.msra.mxu0 0.0
    %444 = vmatprep.subr.mxu0 0.0
    %445 = vmatpush2.msra.mxu0 0.0
    %446 = vmatprep.subr.mxu0 0.0
    %447 = vmatpush2.msra.mxu0 0.0
    %448 = vmatprep.subr.mxu0 0.0
    %449 = vmatpush2.msra.mxu0 0.0
    %450 = vmatprep.subr.mxu0 0.0
    %451 = vmatpush2.msra.mxu0 0.0
    %452 = vmatprep.subr.mxu0 0.0
    %453 = vmatpush2.msra.mxu0 0.0
    %454 = vmatprep.subr.mxu0 0.0
    %455 = vmatpush2.msra.mxu0 0.0
    %456 = vmatprep.subr.mxu0 0.0
    %457 = vmatpush2.msra.mxu0 0.0
    %458 = vmatprep.subr.mxu0 0.0
    %459 = vmatpush2.msra.mxu0 0.0
    %460 = vmatprep.subr.mxu0 0.0
    %461 = vmatpush2.msra.mxu0 0.0
    %462 = vmatprep.subr.mxu0 0.0
    %463 = vmatpush2.msra.mxu0 0.0
    %464 = vmatprep.subr.mxu0 0.0
    %465 = vmatpush2.msra.mxu0 0.0
    %466 = vmatprep.subr.mxu0 0.0
    %467 = vmatpush2.msra.mxu0 0.0
    %468 = vmatprep.subr.mxu0 0.0
    %469 = vmatpush2.msra.mxu0 0.0
    %470 = vmatprep.subr.mxu0 0.0
    %471 = vmatpush2.msra.mxu0 0.0
    %472 = vmatprep.mubr.f32.mxu0 0.0
    %473 = vmatmul.mubr.f32.gmra.mxu0 %v302
    %v474 = vpop.f32.mrf.mxu0
    %v475 = vadd.f32 %v406, %v474
    %v476 = vpop.f32.mrf.mxu0
    %477 = vmatprep.mubr.f32.mxu0 0.0
    %478 = vmatmul.mubr.f32.gmra.mxu0 %v305
    %v479 = vpop.f32.mrf.mxu0
    %v480 = vadd.f32 %v406, %v479
    %v481 = vpop.f32.mrf.mxu0
    %482 = vmatprep.mubr.f32.mxu0 0.0
    %483 = vmatmul.mubr.f32.gmra.mxu0 %v308
    %v484 = vpop.f32.mrf.mxu0
    %v485 = vadd.f32 %v406, %v484
    %v486 = vpop.f32.mrf.mxu0
    %487 = vdwg.mxu0
    %488 = vst [vmem:[%s9] sm:$0xff] %v475
    %489 = vst [vmem:[%s9 + $0x8] sm:$0xff] %v480
    %490 = vst [vmem:[%s9 + $0x10] sm:$0xff] %v485
    // Predicated region
    $region50: #{_zinb_decoder_pallas.1} parent=1 // pred_check
      _
    $region51: #{_zinb_decoder_pallas.1} parent=1 // pred_check_branch
      %492 = sbr.rel (0) target = $region53
    $region52: #{_zinb_decoder_pallas.1} parent=1 // pred_region
      _
    $region53: #{_zinb_decoder_pallas.1} parent=1 // pred_fallthru
      _
    // Predicated region
    $region54: #{_zinb_decoder_pallas.1} parent=1 // pred_check
      _
    $region55: #{_zinb_decoder_pallas.1} parent=1 // pred_check_branch
      %494 = sbr.rel (0) target = $region57
    $region56: #{_zinb_decoder_pallas.1} parent=1 // pred_region
      _
    $region57: #{_zinb_decoder_pallas.1} parent=1 // pred_fallthru
      _
    // Predicated region
    $region58: #{_zinb_decoder_pallas.1} parent=1 // pred_check
      _
    $region59: #{_zinb_decoder_pallas.1} parent=1 // pred_check_branch
      %496 = sbr.rel (0) target = $region61
    $region60: #{_zinb_decoder_pallas.1} parent=1 // pred_region
      _
    $region61: #{_zinb_decoder_pallas.1} parent=1 // pred_fallthru
      _
    // Predicated region
    $region62: #{_zinb_decoder_pallas.1} parent=1 // pred_check
      _
    $region63: #{_zinb_decoder_pallas.1} parent=1 // pred_check_branch
      %498 = sbr.rel (0) target = $region65
    $region64: #{_zinb_decoder_pallas.1} parent=1 // pred_region
      _
    $region65: #{_zinb_decoder_pallas.1} parent=1 // pred_fallthru
      _
    %499 = vsyncpa [#allocation3], 1
    %500 = vsyncpa [#allocation5], 1

</llo_original>
